<compile_context>
chip_gen: v6e
topology: v6e:2x2x1
jax: 0.10.0
libtpu: 0.0.40
codegen_flags: <defaults>
</compile_context>

<pallas_src>
import jax
import jax.numpy as jnp
from jax import lax
from jax.experimental import pallas as pl
from jax.experimental.pallas import tpu as pltpu

EPS = 1e-3


def _stats0_kernel(x_ref, sx_ref, sxx_ref):
    """Accumulate per-channel sum(x) and sum(x*x) over the (N, tile) slab."""
    @pl.when(pl.program_id(0) == 0)
    def _init():
        sx_ref[...] = jnp.zeros_like(sx_ref)
        sxx_ref[...] = jnp.zeros_like(sxx_ref)

    n, c = x_ref.shape[0], x_ref.shape[1]
    sx = jnp.zeros((c, 1), jnp.float32)
    sxx = jnp.zeros((c, 1), jnp.float32)
    for i in range(n):                       # N is small & static -> unrolled
        xn = x_ref[i]                        # (C, tile)
        sx = sx + jnp.sum(xn, axis=-1, keepdims=True)
        sxx = sxx + jnp.sum(xn * xn, axis=-1, keepdims=True)
    sx_ref[...] += sx
    sxx_ref[...] += sxx


def _stats1_kernel(x_ref, a0_ref, c0_ref, sxr_ref, g_ref):
    """Accumulate sum(xr) and Gram xr @ xr^T, where xr = relu(a0*x + c0)."""
    @pl.when(pl.program_id(0) == 0)
    def _init():
        sxr_ref[...] = jnp.zeros_like(sxr_ref)
        g_ref[...] = jnp.zeros_like(g_ref)

    a0 = a0_ref[...]                         # (C, 1)
    c0 = c0_ref[...]                         # (C, 1)
    n, c = x_ref.shape[0], x_ref.shape[1]
    sxr = jnp.zeros((c, 1), jnp.float32)
    g = jnp.zeros((c, c), jnp.float32)
    for i in range(n):
        xr = jnp.maximum(a0 * x_ref[i] + c0, 0.0)            # (C, tile)
        sxr = sxr + jnp.sum(xr, axis=-1, keepdims=True)
        # xr @ xr^T on the MXU (contract the lane/tile axis of both operands).
        g = g + lax.dot_general(xr, xr, (((1,), (1,)), ((), ())),
                                preferred_element_type=jnp.float32)
    sxr_ref[...] += sxr
    g_ref[...] += g


def _apply_kernel(x_ref, a0_ref, c0_ref, w1_ref, c1_ref, o_ref):
    """out = W1 @ relu(a0*x + c0) + c1  with  W1 = a1 * W  (BN1 scale folded in)."""
    a0 = a0_ref[...]
    c0 = c0_ref[...]
    w1 = w1_ref[...]
    c1 = c1_ref[...]
    n = x_ref.shape[0]
    for i in range(n):
        xr = jnp.maximum(a0 * x_ref[i] + c0, 0.0)            # (C, tile)
        o_ref[i] = jnp.dot(w1, xr, preferred_element_type=jnp.float32) + c1


def _pick_tile(hw, n, c, max_block_bytes=256 * 1024):
    """Largest multiple-of-128 divisor of `hw` whose (N, C, tile) f32 block fits
    in ~max_block_bytes; falls back to the full extent (always a legal block)."""
    cap = max(128, max_block_bytes // (n * c * 4))
    best = None
    t = 128
    while t <= min(hw, cap):
        if hw % t == 0:
            best = t
        t += 128
    return best if best is not None else hw


def bn_relu_conv_bn(x_nchw, conv_w, g0, b0, g1, b1):
    """x_nchw: (N, C, H, W) f32; conv_w: (C, C); g*/b*: (C,) BN affine params."""
    n, c, h, wd = x_nchw.shape
    hw = h * wd
    m = n * hw
    x3 = x_nchw.reshape(n, c, hw)            # free view, no transpose
    tile = _pick_tile(hw, n, c)
    num_tiles = hw // tile
    x_bytes = n * c * hw * 4

    x_spec = pl.BlockSpec((n, c, tile), lambda t: (0, 0, t))
    vec_spec = pl.BlockSpec((c, 1), lambda t: (0, 0))
    mat_spec = pl.BlockSpec((c, c), lambda t: (0, 0))
    vec_shape = jax.ShapeDtypeStruct((c, 1), jnp.float32)

    # ---- pass 1: per-channel sum / sum-of-squares of x ----------------------
    sum_x, sum_x2 = pl.pallas_call(
        _stats0_kernel,
        out_shape=(vec_shape, vec_shape),
        grid=(num_tiles,),
        in_specs=[x_spec],
        out_specs=(vec_spec, vec_spec),
        compiler_params=pltpu.CompilerParams(dimension_semantics=("arbitrary",)),
        cost_estimate=pl.CostEstimate(flops=3 * m * c, transcendentals=0,
                                      bytes_accessed=x_bytes + 2 * c * 4),
    )(x3)

    mean0 = sum_x / m
    var0 = jnp.maximum(sum_x2 / m - mean0 * mean0, 0.0)
    a0 = g0.reshape(c, 1) * lax.rsqrt(var0 + EPS)
    c0 = b0.reshape(c, 1) - a0 * mean0

    # ---- pass 2: stats of xr = relu(BN0(x)); BN1 stats via conv linearity ---
    sum_xr, gram = pl.pallas_call(
        _stats1_kernel,
        out_shape=(vec_shape, jax.ShapeDtypeStruct((c, c), jnp.float32)),
        grid=(num_tiles,),
        in_specs=[x_spec, vec_spec, vec_spec],
        out_specs=(vec_spec, mat_spec),
        compiler_params=pltpu.CompilerParams(dimension_semantics=("arbitrary",)),
        cost_estimate=pl.CostEstimate(flops=(2 * c + 4) * m * c, transcendentals=0,
                                      bytes_accessed=x_bytes + (c * c + 3 * c) * 4),
    )(x3, a0, c0)

    mean_xr = sum_xr / m                                     # (C, 1)
    mean1 = conv_w @ mean_xr                                 # (C, 1)
    eyy = jnp.sum((conv_w @ (gram / m)) * conv_w, axis=1, keepdims=True)
    var1 = jnp.maximum(eyy - mean1 * mean1, 0.0)
    a1 = g1.reshape(c, 1) * lax.rsqrt(var1 + EPS)
    c1 = b1.reshape(c, 1) - a1 * mean1
    w1 = a1 * conv_w                                         # fold BN1 scale into conv weight

    # ---- pass 3: fused apply, single streaming write of the output ----------
    out3 = pl.pallas_call(
        _apply_kernel,
        out_shape=jax.ShapeDtypeStruct((n, c, hw), jnp.float32),
        grid=(num_tiles,),
        in_specs=[x_spec, vec_spec, vec_spec, mat_spec, vec_spec],
        out_specs=x_spec,
        compiler_params=pltpu.CompilerParams(dimension_semantics=("parallel",)),
        cost_estimate=pl.CostEstimate(flops=(2 * c + 5) * m * c, transcendentals=0,
                                      bytes_accessed=2 * x_bytes + (c * c + 3 * c) * 4),
    )(x3, a0, c0, w1, c1)

    return out3.reshape(n, c, h, wd)


def _reference(x_nchw, conv_w, g0, b0, g1, b1):
    # Pure-JAX reference of the same forward pass (training-mode BN, biased var).
    def bn(x, g, b):
        mean = jnp.mean(x, axis=(0, 2, 3), keepdims=True)
        var = jnp.mean((x - mean) ** 2, axis=(0, 2, 3), keepdims=True)
        return (x - mean) * lax.rsqrt(var + EPS) * g.reshape(1, -1, 1, 1) \
            + b.reshape(1, -1, 1, 1)

    x = bn(x_nchw, g0, b0)
    x = jnp.maximum(x, 0.0)
    x = jnp.einsum("oc,nchw->nohw", conv_w, x)
    return bn(x, g1, b1)


if __name__ == "__main__":
    # TODO(synk): running-stats (momentum) buffer updates are a training side
    # effect and do not affect the forward output; they are not computed here.
    C = 16                      # fixed by the module
    N, H, W = 2, 64, 64         # small, exercises N>1 and a multi-tile grid

    key = jax.random.PRNGKey(0)
    kx, kw, kg0, kb0, kg1, kb1 = jax.random.split(key, 6)

    x = jax.random.normal(kx, (N, C, H, W), dtype=jnp.float32)
    conv_w = (0.1 * jax.random.normal(kw, (C, C), dtype=jnp.float32))  # (C_out, C_in) 1x1 conv
    gamma0 = 1.0 + 0.1 * jax.random.normal(kg0, (C,), dtype=jnp.float32)
    beta0 = 0.1 * jax.random.normal(kb0, (C,), dtype=jnp.float32)
    gamma1 = 1.0 + 0.1 * jax.random.normal(kg1, (C,), dtype=jnp.float32)
    beta1 = 0.1 * jax.random.normal(kb1, (C,), dtype=jnp.float32)

    out = bn_relu_conv_bn(x, conv_w, gamma0, beta0, gamma1, beta1)
    out = jax.block_until_ready(out)

    ref = _reference(x, conv_w, gamma0, beta0, gamma1, beta1)
    assert out.shape == (N, C, H, W)
    max_err = float(jnp.max(jnp.abs(out - ref)))
    assert max_err < 2e-3, f"mismatch vs. pure-JAX reference: {max_err}"

    print("KERNEL_OK")
</pallas_src>

<mosaic_0001>
module attributes {stable_mosaic.version = 11 : i64} {
  func.func @_stats0_kernel(%arg0: i32, %arg1: memref<2x16x2048xf32, #tpu.memory_space<vmem>>, %arg2: memref<16x1xf32, #tpu.memory_space<vmem>>, %arg3: memref<16x1xf32, #tpu.memory_space<vmem>>) attributes {dimension_semantics = [#tpu.dimension_semantics<arbitrary>], iteration_bounds = array<i64: 2>, scalar_prefetch = 0 : i64, scratch_operands = 0 : i64, tpu.core_type = #tpu.core_type<tc>, window_params = [{transform_indices = @transform_0, window_bounds = array<i64: 2, 16, 2048>}, {pipeline_mode = #tpu.pipeline_mode<synchronous>, transform_indices = @transform_1, window_bounds = array<i64: 16, 1>}, {pipeline_mode = #tpu.pipeline_mode<synchronous>, transform_indices = @transform_2, window_bounds = array<i64: 16, 1>}]} {
    %c0_i32 = arith.constant 0 : i32
    %0 = arith.cmpi eq, %arg0, %c0_i32 : i32
    %1 = arith.extui %0 : i1 to i32
    %c0_i32_0 = arith.constant 0 : i32
    %2 = arith.cmpi ne, %1, %c0_i32_0 : i32
    scf.if %2 {
      %cst_18 = arith.constant 0.000000e+00 : f32
      %29 = vector.broadcast %cst_18 : f32 to vector<16x1xf32>
      %c0_19 = arith.constant 0 : index
      %c0_20 = arith.constant 0 : index
      %30 = vector.load %arg2[%c0_19, %c0_20] : memref<16x1xf32, #tpu.memory_space<vmem>>, vector<16x1xf32>
      tpu.vector_store %arg2[%c0_19, %c0_20], %29 {strides = array<i32>} : memref<16x1xf32, #tpu.memory_space<vmem>>, vector<16x1xf32>,
      %cst_21 = arith.constant 0.000000e+00 : f32
      %31 = vector.broadcast %cst_21 : f32 to vector<16x1xf32>
      %c0_22 = arith.constant 0 : index
      %c0_23 = arith.constant 0 : index
      %32 = vector.load %arg3[%c0_22, %c0_23] : memref<16x1xf32, #tpu.memory_space<vmem>>, vector<16x1xf32>
      tpu.vector_store %arg3[%c0_22, %c0_23], %31 {strides = array<i32>} : memref<16x1xf32, #tpu.memory_space<vmem>>, vector<16x1xf32>,
    } else {
    }
    %cst = arith.constant 0.000000e+00 : f32
    %3 = vector.broadcast %cst : f32 to vector<16x1xf32>
    %cst_1 = arith.constant 0.000000e+00 : f32
    %4 = vector.broadcast %cst_1 : f32 to vector<16x1xf32>
    %c0 = arith.constant 0 : index
    %c0_2 = arith.constant 0 : index
    %c0_3 = arith.constant 0 : index
    %5 = vector.load %arg1[%c0, %c0_2, %c0_3] : memref<2x16x2048xf32, #tpu.memory_space<vmem>>, vector<1x16x2048xf32>
    %6 = vector.shape_cast %5 : vector<1x16x2048xf32> to vector<16x2048xf32>
    %cst_4 = arith.constant dense<0.000000e+00> : vector<16xf32>
    %7 = vector.multi_reduction <add>, %6, %cst_4 [1] : vector<16x2048xf32> to vector<16xf32>
    %8 = vector.shape_cast %7 : vector<16xf32> to vector<16x1xf32>
    %9 = arith.addf %3, %8 : vector<16x1xf32>
    %10 = arith.mulf %6, %6 : vector<16x2048xf32>
    %cst_5 = arith.constant dense<0.000000e+00> : vector<16xf32>
    %11 = vector.multi_reduction <add>, %10, %cst_5 [1] : vector<16x2048xf32> to vector<16xf32>
    %12 = vector.shape_cast %11 : vector<16xf32> to vector<16x1xf32>
    %13 = arith.addf %4, %12 : vector<16x1xf32>
    %c1 = arith.constant 1 : index
    %c0_6 = arith.constant 0 : index
    %c0_7 = arith.constant 0 : index
    %14 = vector.load %arg1[%c1, %c0_6, %c0_7] : memref<2x16x2048xf32, #tpu.memory_space<vmem>>, vector<1x16x2048xf32>
    %15 = vector.shape_cast %14 : vector<1x16x2048xf32> to vector<16x2048xf32>
    %cst_8 = arith.constant dense<0.000000e+00> : vector<16xf32>
    %16 = vector.multi_reduction <add>, %15, %cst_8 [1] : vector<16x2048xf32> to vector<16xf32>
    %17 = vector.shape_cast %16 : vector<16xf32> to vector<16x1xf32>
    %18 = arith.addf %9, %17 : vector<16x1xf32>
    %19 = arith.mulf %15, %15 : vector<16x2048xf32>
    %cst_9 = arith.constant dense<0.000000e+00> : vector<16xf32>
    %20 = vector.multi_reduction <add>, %19, %cst_9 [1] : vector<16x2048xf32> to vector<16xf32>
    %21 = vector.shape_cast %20 : vector<16xf32> to vector<16x1xf32>
    %22 = arith.addf %13, %21 : vector<16x1xf32>
    %c0_10 = arith.constant 0 : index
    %c0_11 = arith.constant 0 : index
    %23 = vector.load %arg2[%c0_10, %c0_11] : memref<16x1xf32, #tpu.memory_space<vmem>>, vector<16x1xf32>
    %24 = arith.addf %23, %18 : vector<16x1xf32>
    %c0_12 = arith.constant 0 : index
    %c0_13 = arith.constant 0 : index
    %25 = vector.load %arg2[%c0_12, %c0_13] : memref<16x1xf32, #tpu.memory_space<vmem>>, vector<16x1xf32>
    tpu.vector_store %arg2[%c0_12, %c0_13], %24 {strides = array<i32>} : memref<16x1xf32, #tpu.memory_space<vmem>>, vector<16x1xf32>,
    %c0_14 = arith.constant 0 : index
    %c0_15 = arith.constant 0 : index
    %26 = vector.load %arg3[%c0_14, %c0_15] : memref<16x1xf32, #tpu.memory_space<vmem>>, vector<16x1xf32>
    %27 = arith.addf %26, %22 : vector<16x1xf32>
    %c0_16 = arith.constant 0 : index
    %c0_17 = arith.constant 0 : index
    %28 = vector.load %arg3[%c0_16, %c0_17] : memref<16x1xf32, #tpu.memory_space<vmem>>, vector<16x1xf32>
    tpu.vector_store %arg3[%c0_16, %c0_17], %27 {strides = array<i32>} : memref<16x1xf32, #tpu.memory_space<vmem>>, vector<16x1xf32>,
    return
  }
  func.func @transform_0(%arg0: i32) -> (i32, i32, i32) {
    %c0_i32 = arith.constant 0 : i32
    %c0_i32_0 = arith.constant 0 : i32
    %c0_i32_1 = arith.constant 0 : i32
    return %c0_i32, %c0_i32_0, %arg0 : i32, i32, i32
  }
  func.func @transform_1(%arg0: i32) -> (i32, i32) {
    %c0_i32 = arith.constant 0 : i32
    %c0_i32_0 = arith.constant 0 : i32
    %c0_i32_1 = arith.constant 0 : i32
    return %c0_i32, %c0_i32_0 : i32, i32
  }
  func.func @transform_2(%arg0: i32) -> (i32, i32) {
    %c0_i32 = arith.constant 0 : i32
    %c0_i32_0 = arith.constant 0 : i32
    %c0_i32_1 = arith.constant 0 : i32
    return %c0_i32, %c0_i32_0 : i32, i32
  }
}

</mosaic_0001>

<llo_original>
// kernel: tpu_custom_call.1
$region0: #{tpu_custom_call.1}
  #allocation0 [shape = 'u32[]', space=smem, size = 0x4, offset = 0x4, fixed_abs, tag = 'smem constant byte address 0x4 - core index']
  #allocation1 [shape = 'u32[144,128]{1,0:T(1,128)}', space=vmem, size = 0x12000, scoped, tag = 'internal scratch']
  %s0 = inlined_call_operand.hbm [shape: f32[2,16,4096], index: 0, kind: input, shape index: {}]
  %s1 = inlined_call_operand.vmem [shape: f32[16,1], index: 1, kind: output, shape index: {0}]
  %s2 = inlined_call_operand.vmem [shape: f32[16,1], index: 2, kind: output, shape index: {1}]
  %3 = xla_tuple %s1, %s2
  %s4 = sld [smem:[#allocation0]]
  $region53: #{tpu_custom_call.1} parent=0
    _
  %s6 = ssub.s32 1, %s4
  %s7 = scalar_select 0, %s6, %s4
  $region1: #{tpu_custom_call.1} parent=0
    #allocation2 [shape = 'u8[524288]{0}', space=vmem, size = 0x80000, scoped, tag = 'input window, operand 0']
    #allocation3 [shape = 's32[2]{0}', space=sflag, size = 0x8, scoped, tag = 'scoped memory for tpu_custom_call.1']
    %8 = vsyncpa [#allocation3], 0
    %s9 = scalar_lea.sflag [#allocation3], 1
    %10 = vsyncpa %s9, 0
    loop: start=0, step=1, limit=4
    $region2: #{tpu_custom_call.1} parent=1 // loop_pre_header
      _
    $region3: #{tpu_custom_call.1} parent=1 // loop_header
      %s12 = sphi 0, %s16
      %p13 = scmp.ge.s32.totalorder %s12, 4
      %s22 = sphi 0, %s24
      %s25 = sphi 0, %s22
      %s26 = sphi 0, %s25
      %s42 = sphi 0, %s26
      %s46 = sphi 0, %s46
      %s48 = sphi 0, %s46
      %s49 = sphi 0, %s48
      %s63 = sphi 0, %s49
      %s67 = sphi 0, %s67
      %s69 = sphi 0, %s67
      %s70 = sphi 0, %s69
      %s84 = sphi 0, %s70
    $region4: #{tpu_custom_call.1} parent=1 // loop_header_branch
      %15 = sbr.rel (%p13) target = $region8
    $region5: #{tpu_custom_call.1} parent=1 // loop_body
      %s17 = ssub.s32 %s12, 1
      %s18 = ssub.s32 %s12, 2
      %s19 = sadd.s32 %s12, 1
      %s20 = ssub.s32 %s12, %s19
      %p21 = scmp.eq.s32.totalorder %s20, 0
      %s23 = sadd.s32 %s22, 1
      %s24 = scalar_select %p21, %s22, %s23
      %p27 = pneg %p21
      %p28 = scmp.eq.s32.totalorder %s12, 1
      %p29 = por %p27, %p28
      %p30 = scmp.ne.s32.totalorder %s22, %s25
      %p31 = scmp.eq.s32.totalorder %s12, 0
      %p32 = por %p30, %p31
      %p33 = scmp.ne.s32.totalorder %s22, %s25
      %p34 = scmp.eq.s32.totalorder %s17, 1
      %p35 = por %p33, %p34
      %p36 = scmp.ne.s32.totalorder %s25, %s26
      %p37 = scmp.eq.s32.totalorder %s17, 0
      %p38 = por %p36, %p37
      %p39 = scmp.ne.s32.totalorder %s25, %s26
      %p40 = scmp.eq.s32.totalorder %s18, 1
      %p41 = por %p39, %p40
      %p43 = scmp.ne.s32.totalorder %s26, %s42
      %p44 = scmp.eq.s32.totalorder %s18, 0
      %p45 = por %p43, %p44
      %s47 = sadd.s32 %s46, 1
      %p50 = scmp.eq.s32.totalorder %s12, 1
      %p51 = scmp.ne.s32.totalorder %s46, %s48
      %p52 = scmp.eq.s32.totalorder %s12, 0
      %p53 = por %p51, %p52
      %p54 = scmp.ne.s32.totalorder %s46, %s48
      %p55 = scmp.eq.s32.totalorder %s17, 1
      %p56 = por %p54, %p55
      %p57 = scmp.ne.s32.totalorder %s48, %s49
      %p58 = scmp.eq.s32.totalorder %s17, 0
      %p59 = por %p57, %p58
      %p60 = scmp.ne.s32.totalorder %s48, %s49
      %p61 = scmp.eq.s32.totalorder %s18, 1
      %p62 = por %p60, %p61
      %p64 = scmp.ne.s32.totalorder %s49, %s63
      %p65 = scmp.eq.s32.totalorder %s18, 0
      %p66 = por %p64, %p65
      %s68 = sadd.s32 %s67, 1
      %p71 = scmp.eq.s32.totalorder %s12, 1
      %p72 = scmp.ne.s32.totalorder %s67, %s69
      %p73 = scmp.eq.s32.totalorder %s12, 0
      %p74 = por %p72, %p73
      %p75 = scmp.ne.s32.totalorder %s67, %s69
      %p76 = scmp.eq.s32.totalorder %s17, 1
      %p77 = por %p75, %p76
      %p78 = scmp.ne.s32.totalorder %s69, %s70
      %p79 = scmp.eq.s32.totalorder %s17, 0
      %p80 = por %p78, %p79
      %p81 = scmp.ne.s32.totalorder %s69, %s70
      %p82 = scmp.eq.s32.totalorder %s18, 1
      %p83 = por %p81, %p82
      %p85 = scmp.ne.s32.totalorder %s70, %s84
      %p86 = scmp.eq.s32.totalorder %s18, 0
      %p87 = por %p85, %p86
      %p88 = scmp.le.s32.totalorder 1, %s12
      %p89 = scmp.lt.s32.totalorder %s12, 3
      %p90 = pnand %p88, %p89
      %p91 = pneg %p90
      // Predicated region
      $region9: #{tpu_custom_call.1} parent=5 // pred_check
        _
      $region10: #{tpu_custom_call.1} parent=5 // pred_check_branch
        %93 = sbr.rel (%p90) target = $region12
      $region11: #{tpu_custom_call.1} parent=5 // pred_region
        %s94 = ssub.s32 %s12, 1
      $region12: #{tpu_custom_call.1} parent=5 // pred_fallthru
        _
      %p95 = scmp.lt.s32.totalorder %s12, 2
      // Predicated region
      $region13: #{tpu_custom_call.1} parent=5 // pred_check
        %p96 = pneg %p95
      $region14: #{tpu_custom_call.1} parent=5 // pred_check_branch
        %98 = sbr.rel (%p96) target = $region16
      $region15: #{tpu_custom_call.1} parent=5 // pred_region
        // Predicated region
        $region17: #{tpu_custom_call.1} parent=15 // pred_check
          %p99 = pneg %p32
        $region18: #{tpu_custom_call.1} parent=15 // pred_check_branch
          %101 = sbr.rel (%p99) target = $region20
        $region19: #{tpu_custom_call.1} parent=15 // pred_region
          %s102 = sand.u32 %s22, 1
          %s103 = scalar_lea.sflag [#allocation3], %s102
          %s104 = sand.u32 %s22, 1
          %s105 = smul.addr %s104, 512
          %s106 = scalar_lea.vmem [#allocation2], %s105
          %s107 = smul.u32 16, %s12
          %s109 = ssub.s32 8192, 8192
          %110 = vsyncadd %s103, %s109
          %s111 = smul.addr %s107, 128
          %s112 = scalar_lea.hbm %s0, %s111
          %s113 = sshll.u32 %s106, 4
          %s114 = int_to_ptr.vmem [resolvable:$true] %s113
          %119 = dma.hbm_to_vmem [thread:$0]  %s112, 8192, %s114, %s103, 4096, 2048, 128
        $region20: #{tpu_custom_call.1} parent=15 // pred_fallthru
          _
      $region16: #{tpu_custom_call.1} parent=5 // pred_fallthru
        _
      %p120 = scmp.le.s32.totalorder 1, %s12
      %p121 = scmp.lt.s32.totalorder %s12, 3
      %p122 = pnand %p120, %p121
      %p123 = pneg %p122
      // Predicated region
      $region21: #{tpu_custom_call.1} parent=5 // pred_check
        _
      $region22: #{tpu_custom_call.1} parent=5 // pred_check_branch
        %125 = sbr.rel (%p122) target = $region24
      $region23: #{tpu_custom_call.1} parent=5 // pred_region
        %s126 = ssub.s32 %s12, 1
        %s127 = sand.u32 %s25, 1
        %s128 = scalar_lea.sflag [#allocation3], %s127
        %s129 = sand.u32 %s25, 1
        %s130 = smul.addr %s129, 512
        %s131 = scalar_lea.vmem [#allocation2], %s130
        // Predicated region
        $region25: #{tpu_custom_call.1} parent=23 // pred_check
          %p132 = pneg %p38
        $region26: #{tpu_custom_call.1} parent=23 // pred_check_branch
          %134 = sbr.rel (%p132) target = $region28
        $region27: #{tpu_custom_call.1} parent=23 // pred_region
          %135 = dma.done %s128, 8192
        $region28: #{tpu_custom_call.1} parent=23 // pred_fallthru
          _
        %s136 = sand.u32 %s25, 1
        %s137 = scalar_lea.sflag [#allocation3], %s136
        %s138 = sand.u32 %s25, 1
        %s139 = smul.addr %s138, 512
        %s140 = scalar_lea.vmem [#allocation2], %s139
        %p141 = pneg %p38
        %p142 = pneg %p35
        %p143 = pneg %p59
        %p144 = pneg %p56
        %p145 = pneg %p80
        %p146 = pneg %p77
        %s147 = smul.u32 16, %s17
        %p148 = scmp.eq.s32.totalorder %s17, 0
        // Predicated region
        $region29: #{tpu_custom_call.1} parent=23 // pred_check
          %p149 = pneg %p148
        $region30: #{tpu_custom_call.1} parent=23 // pred_check_branch
          %151 = sbr.rel (%p149) target = $region32
        $region31: #{tpu_custom_call.1} parent=23 // pred_region
          %vm152 = vcmask 7168
          %153 = vst.msk [vmem:[%s1] sm:$0xff] %vm152, 0.0
          %154 = vst.msk [vmem:[%s1 + $0x8] sm:$0xff] %vm152, 0.0
          %155 = vst.msk [vmem:[%s2] sm:$0xff] %vm152, 0.0
          %156 = vst.msk [vmem:[%s2 + $0x8] sm:$0xff] %vm152, 0.0
        $region32: #{tpu_custom_call.1} parent=23 // pred_fallthru
          _
        %v157 = vld [vmem:[%s131] sm:$0xff]
        %v158 = vld [vmem:[%s131 + $0x8] sm:$0xff]
        %v159 = vld [vmem:[%s131 + $0x10] sm:$0xff]
        %v160 = vld [vmem:[%s131 + $0x18] sm:$0xff]
        %v161 = vld [vmem:[%s131 + $0x20] sm:$0xff]
        %v162 = vld [vmem:[%s131 + $0x28] sm:$0xff]
        %v163 = vld [vmem:[%s131 + $0x30] sm:$0xff]
        %v164 = vld [vmem:[%s131 + $0x38] sm:$0xff]
        %v165 = vld [vmem:[%s131 + $0x40] sm:$0xff]
        %v166 = vld [vmem:[%s131 + $0x48] sm:$0xff]
        %v167 = vld [vmem:[%s131 + $0x50] sm:$0xff]
        %v168 = vld [vmem:[%s131 + $0x58] sm:$0xff]
        %v169 = vld [vmem:[%s131 + $0x60] sm:$0xff]
        %v170 = vld [vmem:[%s131 + $0x68] sm:$0xff]
        %v171 = vld [vmem:[%s131 + $0x70] sm:$0xff]
        %v172 = vld [vmem:[%s131 + $0x78] sm:$0xff]
        %v173 = vld [vmem:[%s131 + $0x80] sm:$0xff]
        %v174 = vld [vmem:[%s131 + $0x88] sm:$0xff]
        %v175 = vld [vmem:[%s131 + $0x90] sm:$0xff]
        %v176 = vld [vmem:[%s131 + $0x98] sm:$0xff]
        %v177 = vld [vmem:[%s131 + $0xa0] sm:$0xff]
        %v178 = vld [vmem:[%s131 + $0xa8] sm:$0xff]
        %v179 = vld [vmem:[%s131 + $0xb0] sm:$0xff]
        %v180 = vld [vmem:[%s131 + $0xb8] sm:$0xff]
        %v181 = vld [vmem:[%s131 + $0xc0] sm:$0xff]
        %v182 = vld [vmem:[%s131 + $0xc8] sm:$0xff]
        %v183 = vld [vmem:[%s131 + $0xd0] sm:$0xff]
        %v184 = vld [vmem:[%s131 + $0xd8] sm:$0xff]
        %v185 = vld [vmem:[%s131 + $0xe0] sm:$0xff]
        %v186 = vld [vmem:[%s131 + $0xe8] sm:$0xff]
        %v187 = vld [vmem:[%s131 + $0xf0] sm:$0xff]
        %v188 = vld [vmem:[%s131 + $0xf8] sm:$0xff]
        %v189 = vadd.f32 %v157, %v158
        %v190 = vadd.f32 %v189, %v159
        %v191 = vadd.f32 %v190, %v160
        %v192 = vadd.f32 %v191, %v161
        %v193 = vadd.f32 %v192, %v162
        %v194 = vadd.f32 %v193, %v163
        %v195 = vadd.f32 %v194, %v164
        %v196 = vadd.f32 %v195, %v165
        %v197 = vadd.f32 %v196, %v166
        %v198 = vadd.f32 %v197, %v167
        %v199 = vadd.f32 %v198, %v168
        %v200 = vadd.f32 %v199, %v169
        %v201 = vadd.f32 %v200, %v170
        %v202 = vadd.f32 %v201, %v171
        %v203 = vadd.f32 %v202, %v172
        %204 = vadd.xlane.f32.xlu0 %v203
        %v205 = vpop.xlane.xlu0 %204
        %v206 = vadd.f32 %v173, %v174
        %v207 = vadd.f32 %v206, %v175
        %v208 = vadd.f32 %v207, %v176
        %v209 = vadd.f32 %v208, %v177
        %v210 = vadd.f32 %v209, %v178
        %v211 = vadd.f32 %v210, %v179
        %v212 = vadd.f32 %v211, %v180
        %v213 = vadd.f32 %v212, %v181
        %v214 = vadd.f32 %v213, %v182
        %v215 = vadd.f32 %v214, %v183
        %v216 = vadd.f32 %v215, %v184
        %v217 = vadd.f32 %v216, %v185
        %v218 = vadd.f32 %v217, %v186
        %v219 = vadd.f32 %v218, %v187
        %v220 = vadd.f32 %v219, %v188
        %221 = vadd.xlane.f32.xlu0 %v220
        %v222 = vpop.xlane.xlu0 %221
        %v223 = vadd.f32 %v205, 0.0
        %v224 = vadd.f32 %v222, 0.0
        %v225 = vmul.f32 %v157, %v157
        %v226 = vmul.f32 %v158, %v158
        %v227 = vmul.f32 %v159, %v159
        %v228 = vmul.f32 %v160, %v160
        %v229 = vmul.f32 %v161, %v161
        %v230 = vmul.f32 %v162, %v162
        %v231 = vmul.f32 %v163, %v163
        %v232 = vmul.f32 %v164, %v164
        %v233 = vmul.f32 %v165, %v165
        %v234 = vmul.f32 %v166, %v166
        %v235 = vmul.f32 %v167, %v167
        %v236 = vmul.f32 %v168, %v168
        %v237 = vmul.f32 %v169, %v169
        %v238 = vmul.f32 %v170, %v170
        %v239 = vmul.f32 %v171, %v171
        %v240 = vmul.f32 %v172, %v172
        %v241 = vmul.f32 %v173, %v173
        %v242 = vmul.f32 %v174, %v174
        %v243 = vmul.f32 %v175, %v175
        %v244 = vmul.f32 %v176, %v176
        %v245 = vmul.f32 %v177, %v177
        %v246 = vmul.f32 %v178, %v178
        %v247 = vmul.f32 %v179, %v179
        %v248 = vmul.f32 %v180, %v180
        %v249 = vmul.f32 %v181, %v181
        %v250 = vmul.f32 %v182, %v182
        %v251 = vmul.f32 %v183, %v183
        %v252 = vmul.f32 %v184, %v184
        %v253 = vmul.f32 %v185, %v185
        %v254 = vmul.f32 %v186, %v186
        %v255 = vmul.f32 %v187, %v187
        %v256 = vmul.f32 %v188, %v188
        %v257 = vadd.f32 %v225, %v226
        %v258 = vadd.f32 %v257, %v227
        %v259 = vadd.f32 %v258, %v228
        %v260 = vadd.f32 %v259, %v229
        %v261 = vadd.f32 %v260, %v230
        %v262 = vadd.f32 %v261, %v231
        %v263 = vadd.f32 %v262, %v232
        %v264 = vadd.f32 %v263, %v233
        %v265 = vadd.f32 %v264, %v234
        %v266 = vadd.f32 %v265, %v235
        %v267 = vadd.f32 %v266, %v236
        %v268 = vadd.f32 %v267, %v237
        %v269 = vadd.f32 %v268, %v238
        %v270 = vadd.f32 %v269, %v239
        %v271 = vadd.f32 %v270, %v240
        %272 = vadd.xlane.f32.xlu0 %v271
        %v273 = vpop.xlane.xlu0 %272
        %v274 = vadd.f32 %v241, %v242
        %v275 = vadd.f32 %v274, %v243
        %v276 = vadd.f32 %v275, %v244
        %v277 = vadd.f32 %v276, %v245
        %v278 = vadd.f32 %v277, %v246
        %v279 = vadd.f32 %v278, %v247
        %v280 = vadd.f32 %v279, %v248
        %v281 = vadd.f32 %v280, %v249
        %v282 = vadd.f32 %v281, %v250
        %v283 = vadd.f32 %v282, %v251
        %v284 = vadd.f32 %v283, %v252
        %v285 = vadd.f32 %v284, %v253
        %v286 = vadd.f32 %v285, %v254
        %v287 = vadd.f32 %v286, %v255
        %v288 = vadd.f32 %v287, %v256
        %289 = vadd.xlane.f32.xlu0 %v288
        %v290 = vpop.xlane.xlu0 %289
        %v291 = vadd.f32 %v273, 0.0
        %v292 = vadd.f32 %v290, 0.0
        %s293 = scalar_lea.vmem %s131, 256 [#allocation2]
        %v294 = vld [vmem:[%s293] sm:$0xff]
        %v295 = vld [vmem:[%s293 + $0x8] sm:$0xff]
        %v296 = vld [vmem:[%s293 + $0x10] sm:$0xff]
        %v297 = vld [vmem:[%s293 + $0x18] sm:$0xff]
        %v298 = vld [vmem:[%s293 + $0x20] sm:$0xff]
        %v299 = vld [vmem:[%s293 + $0x28] sm:$0xff]
        %v300 = vld [vmem:[%s293 + $0x30] sm:$0xff]
        %v301 = vld [vmem:[%s293 + $0x38] sm:$0xff]
        %v302 = vld [vmem:[%s293 + $0x40] sm:$0xff]
        %v303 = vld [vmem:[%s293 + $0x48] sm:$0xff]
        %v304 = vld [vmem:[%s293 + $0x50] sm:$0xff]
        %v305 = vld [vmem:[%s293 + $0x58] sm:$0xff]
        %v306 = vld [vmem:[%s293 + $0x60] sm:$0xff]
        %v307 = vld [vmem:[%s293 + $0x68] sm:$0xff]
        %v308 = vld [vmem:[%s293 + $0x70] sm:$0xff]
        %v309 = vld [vmem:[%s293 + $0x78] sm:$0xff]
        %v310 = vld [vmem:[%s293 + $0x80] sm:$0xff]
        %v311 = vld [vmem:[%s293 + $0x88] sm:$0xff]
        %v312 = vld [vmem:[%s293 + $0x90] sm:$0xff]
        %v313 = vld [vmem:[%s293 + $0x98] sm:$0xff]
        %v314 = vld [vmem:[%s293 + $0xa0] sm:$0xff]
        %v315 = vld [vmem:[%s293 + $0xa8] sm:$0xff]
        %v316 = vld [vmem:[%s293 + $0xb0] sm:$0xff]
        %v317 = vld [vmem:[%s293 + $0xb8] sm:$0xff]
        %v318 = vld [vmem:[%s293 + $0xc0] sm:$0xff]
        %v319 = vld [vmem:[%s293 + $0xc8] sm:$0xff]
        %v320 = vld [vmem:[%s293 + $0xd0] sm:$0xff]
        %v321 = vld [vmem:[%s293 + $0xd8] sm:$0xff]
        %v322 = vld [vmem:[%s293 + $0xe0] sm:$0xff]
        %v323 = vld [vmem:[%s293 + $0xe8] sm:$0xff]
        %v324 = vld [vmem:[%s293 + $0xf0] sm:$0xff]
        %v325 = vld [vmem:[%s293 + $0xf8] sm:$0xff]
        %v326 = vadd.f32 %v294, %v295
        %v327 = vadd.f32 %v326, %v296
        %v328 = vadd.f32 %v327, %v297
        %v329 = vadd.f32 %v328, %v298
        %v330 = vadd.f32 %v329, %v299
        %v331 = vadd.f32 %v330, %v300
        %v332 = vadd.f32 %v331, %v301
        %v333 = vadd.f32 %v332, %v302
        %v334 = vadd.f32 %v333, %v303
        %v335 = vadd.f32 %v334, %v304
        %v336 = vadd.f32 %v335, %v305
        %v337 = vadd.f32 %v336, %v306
        %v338 = vadd.f32 %v337, %v307
        %v339 = vadd.f32 %v338, %v308
        %v340 = vadd.f32 %v339, %v309
        %341 = vadd.xlane.f32.xlu0 %v340
        %v342 = vpop.xlane.xlu0 %341
        %v343 = vadd.f32 %v310, %v311
        %v344 = vadd.f32 %v343, %v312
        %v345 = vadd.f32 %v344, %v313
        %v346 = vadd.f32 %v345, %v314
        %v347 = vadd.f32 %v346, %v315
        %v348 = vadd.f32 %v347, %v316
        %v349 = vadd.f32 %v348, %v317
        %v350 = vadd.f32 %v349, %v318
        %v351 = vadd.f32 %v350, %v319
        %v352 = vadd.f32 %v351, %v320
        %v353 = vadd.f32 %v352, %v321
        %v354 = vadd.f32 %v353, %v322
        %v355 = vadd.f32 %v354, %v323
        %v356 = vadd.f32 %v355, %v324
        %v357 = vadd.f32 %v356, %v325
        %358 = vadd.xlane.f32.xlu0 %v357
        %v359 = vpop.xlane.xlu0 %358
        %v360 = vadd.f32 %v223, %v342
        %v361 = vadd.f32 %v224, %v359
        %v362 = vmul.f32 %v294, %v294
        %v363 = vmul.f32 %v295, %v295
        %v364 = vmul.f32 %v296, %v296
        %v365 = vmul.f32 %v297, %v297
        %v366 = vmul.f32 %v298, %v298
        %v367 = vmul.f32 %v299, %v299
        %v368 = vmul.f32 %v300, %v300
        %v369 = vmul.f32 %v301, %v301
        %v370 = vmul.f32 %v302, %v302
        %v371 = vmul.f32 %v303, %v303
        %v372 = vmul.f32 %v304, %v304
        %v373 = vmul.f32 %v305, %v305
        %v374 = vmul.f32 %v306, %v306
        %v375 = vmul.f32 %v307, %v307
        %v376 = vmul.f32 %v308, %v308
        %v377 = vmul.f32 %v309, %v309
        %v378 = vmul.f32 %v310, %v310
        %v379 = vmul.f32 %v311, %v311
        %v380 = vmul.f32 %v312, %v312
        %v381 = vmul.f32 %v313, %v313
        %v382 = vmul.f32 %v314, %v314
        %v383 = vmul.f32 %v315, %v315
        %v384 = vmul.f32 %v316, %v316
        %v385 = vmul.f32 %v317, %v317
        %v386 = vmul.f32 %v318, %v318
        %v387 = vmul.f32 %v319, %v319
        %v388 = vmul.f32 %v320, %v320
        %v389 = vmul.f32 %v321, %v321
        %v390 = vmul.f32 %v322, %v322
        %v391 = vmul.f32 %v323, %v323
        %v392 = vmul.f32 %v324, %v324
        %v393 = vmul.f32 %v325, %v325
        %v394 = vadd.f32 %v362, %v363
        %v395 = vadd.f32 %v394, %v364
        %v396 = vadd.f32 %v395, %v365
        %v397 = vadd.f32 %v396, %v366
        %v398 = vadd.f32 %v397, %v367
        %v399 = vadd.f32 %v398, %v368
        %v400 = vadd.f32 %v399, %v369
        %v401 = vadd.f32 %v400, %v370
        %v402 = vadd.f32 %v401, %v371
        %v403 = vadd.f32 %v402, %v372
        %v404 = vadd.f32 %v403, %v373
        %v405 = vadd.f32 %v404, %v374
        %v406 = vadd.f32 %v405, %v375
        %v407 = vadd.f32 %v406, %v376
        %v408 = vadd.f32 %v407, %v377
        %409 = vadd.xlane.f32.xlu0 %v408
        %v410 = vpop.xlane.xlu0 %409
        %v411 = vadd.f32 %v378, %v379
        %v412 = vadd.f32 %v411, %v380
        %v413 = vadd.f32 %v412, %v381
        %v414 = vadd.f32 %v413, %v382
        %v415 = vadd.f32 %v414, %v383
        %v416 = vadd.f32 %v415, %v384
        %v417 = vadd.f32 %v416, %v385
        %v418 = vadd.f32 %v417, %v386
        %v419 = vadd.f32 %v418, %v387
        %v420 = vadd.f32 %v419, %v388
        %v421 = vadd.f32 %v420, %v389
        %v422 = vadd.f32 %v421, %v390
        %v423 = vadd.f32 %v422, %v391
        %v424 = vadd.f32 %v423, %v392
        %v425 = vadd.f32 %v424, %v393
        %426 = vadd.xlane.f32.xlu0 %v425
        %v427 = vpop.xlane.xlu0 %426
        %v428 = vadd.f32 %v291, %v410
        %v429 = vadd.f32 %v292, %v427
        %v430 = vld [vmem:[%s1] sm:$0xff]
        %v431 = vld [vmem:[%s1 + $0x8] sm:$0xff]
        %v432 = vadd.f32 %v430, %v360
        %v433 = vadd.f32 %v431, %v361
        %vm434 = vcmask 7168
        %435 = vst.msk [vmem:[%s1] sm:$0xff] %vm434, %v432
        %436 = vst.msk [vmem:[%s1 + $0x8] sm:$0xff] %vm434, %v433
        %v437 = vld [vmem:[%s2] sm:$0xff]
        %v438 = vld [vmem:[%s2 + $0x8] sm:$0xff]
        %v439 = vadd.f32 %v437, %v428
        %v440 = vadd.f32 %v438, %v429
        %441 = vst.msk [vmem:[%s2] sm:$0xff] %vm434, %v439
        %442 = vst.msk [vmem:[%s2 + $0x8] sm:$0xff] %vm434, %v440
        // Predicated region
        $region33: #{tpu_custom_call.1} parent=23 // pred_check
          %p443 = pneg %p56
        $region34: #{tpu_custom_call.1} parent=23 // pred_check_branch
          %445 = sbr.rel (%p443) target = $region36
        $region35: #{tpu_custom_call.1} parent=23 // pred_region
          _
        $region36: #{tpu_custom_call.1} parent=23 // pred_fallthru
          _
        // Predicated region
        $region37: #{tpu_custom_call.1} parent=23 // pred_check
          %p446 = pneg %p77
        $region38: #{tpu_custom_call.1} parent=23 // pred_check_branch
          %448 = sbr.rel (%p446) target = $region40
        $region39: #{tpu_custom_call.1} parent=23 // pred_region
          _
        $region40: #{tpu_custom_call.1} parent=23 // pred_fallthru
          _
        // Predicated region
        $region41: #{tpu_custom_call.1} parent=23 // pred_check
          %p449 = pneg %p56
        $region42: #{tpu_custom_call.1} parent=23 // pred_check_branch
          %451 = sbr.rel (%p449) target = $region44
        $region43: #{tpu_custom_call.1} parent=23 // pred_region
          _
        $region44: #{tpu_custom_call.1} parent=23 // pred_fallthru
          _
        // Predicated region
        $region45: #{tpu_custom_call.1} parent=23 // pred_check
          %p452 = pneg %p77
        $region46: #{tpu_custom_call.1} parent=23 // pred_check_branch
          %454 = sbr.rel (%p452) target = $region48
        $region47: #{tpu_custom_call.1} parent=23 // pred_region
          _
        $region48: #{tpu_custom_call.1} parent=23 // pred_fallthru
          _
      $region24: #{tpu_custom_call.1} parent=5 // pred_fallthru
        _
      %p455 = scmp.le.s32.totalorder 2, %s12
      // Predicated region
      $region49: #{tpu_custom_call.1} parent=5 // pred_check
        %p456 = pneg %p455
      $region50: #{tpu_custom_call.1} parent=5 // pred_check_branch
        %458 = sbr.rel (%p456) target = $region52
      $region51: #{tpu_custom_call.1} parent=5 // pred_region
        %s459 = ssub.s32 %s12, 2
      $region52: #{tpu_custom_call.1} parent=5 // pred_fallthru
        _
    $region6: #{tpu_custom_call.1} parent=1 // loop_footer
      %s16 = sadd.s32 1, %s12
    $region7: #{tpu_custom_call.1} parent=1 // loop_footer_branch
      %11 = sbr.rel target = $region3
    $region8: #{tpu_custom_call.1} parent=1 // loop_exit
      _
    %460 = vsyncpa [#allocation3], 1
    %s461 = scalar_lea.sflag [#allocation3], 1
    %462 = vsyncpa %s461, 1

</llo_original>
